<compile_context>
chip_gen: v5e
topology: v5e:2x2
jax: 0.10.0
libtpu: 0.0.40
codegen_flags: <defaults>
</compile_context>

<pallas_src>
import jax
import jax.numpy as jnp
from jax.experimental import pallas as pl
from jax.experimental.pallas import tpu as pltpu


def _conv_bn_relu_kernel(w_ref, scale_ref, bias_ref, x_ref, o_ref):
    # w_ref:     (Cout, Cin)      1x1 conv weight
    # scale_ref: (Cout, 1)        folded BN scale = gamma / sqrt(var + eps)
    # bias_ref:  (Cout, 1)        folded BN bias  = beta - mean * scale
    # x_ref:     (Cin, block_m)   spatial tile (lane-dense)
    # o_ref:     (Cout, block_m)  output tile (lane-dense)
    y = jnp.dot(w_ref[...], x_ref[...], preferred_element_type=jnp.float32)
    y = y * scale_ref[...] + bias_ref[...]          # f32 epilogue (safe on v5e too)
    o_ref[...] = jnp.maximum(y, 0.0).astype(o_ref.dtype)


def conv2d_bn_relu(x_nchw, weight, gamma, beta, running_mean, running_var,
                   eps=1e-3, block_m=1024):
    """1x1 Conv2d (no bias) + BatchNorm2d (eval) + ReLU. NCHW in / NCHW out."""
    n, cin, h, w = x_nchw.shape
    cout = weight.shape[0]
    hw = h * w

    # Fold BN (eval semantics, running stats) into per-output-channel affine.
    scale = gamma / jnp.sqrt(running_var + eps)      # (Cout,)
    bias = beta - running_mean * scale               # (Cout,)

    # NCHW -> (N, Cin, H*W): pure reshape, no transpose / extra HBM traffic.
    x3 = x_nchw.reshape(n, cin, hw)
    # Conv weight (Cout, Cin, 1, 1) -> (Cout, Cin): also a pure reshape.
    w_mat = weight.reshape(cout, cin)

    # Block along the spatial axis must be a multiple of 128 (lane-dense,
    # unmasked stores) or equal to the full extent.
    if hw <= block_m:
        block_m = hw
    else:
        block_m = max(128, (block_m // 128) * 128)

    grid = (n, pl.cdiv(hw, block_m))

    out = pl.pallas_call(
        _conv_bn_relu_kernel,
        out_shape=jax.ShapeDtypeStruct((n, cout, hw), x_nchw.dtype),
        grid=grid,
        in_specs=[
            # Weight / scale / bias stay resident (same block every step).
            pl.BlockSpec((cout, cin), lambda b, i: (0, 0)),
            pl.BlockSpec((cout, 1), lambda b, i: (0, 0)),
            pl.BlockSpec((cout, 1), lambda b, i: (0, 0)),
            # x tile: batch dim squeezed, lane-dense spatial tile.
            pl.BlockSpec((None, cin, block_m), lambda b, i: (b, 0, i)),
        ],
        out_specs=pl.BlockSpec((None, cout, block_m), lambda b, i: (b, 0, i)),
        compiler_params=pltpu.CompilerParams(
            dimension_semantics=("parallel", "parallel"),
        ),
        cost_estimate=pl.CostEstimate(
            flops=2 * n * hw * cin * cout,
            transcendentals=0,
            bytes_accessed=4 * (n * cin * hw + cout * cin + n * cout * hw),
        ),
    )(w_mat, scale.reshape(cout, 1), bias.reshape(cout, 1), x3)

    # (N, Cout, H*W) -> NCHW: pure reshape.
    return out.reshape(n, cout, h, w)


if __name__ == "__main__":
    key = jax.random.PRNGKey(0)
    k_x, k_w, k_g, k_b, k_m, k_v = jax.random.split(key, 6)

    N, CIN, H, W = 1, 24, 56, 56
    COUT = 72

    x19 = jax.random.normal(k_x, (N, CIN, H, W), dtype=jnp.float32)
    conv_weight = jax.random.normal(k_w, (COUT, CIN, 1, 1), dtype=jnp.float32) * 0.1
    gamma = 1.0 + 0.1 * jax.random.normal(k_g, (COUT,), dtype=jnp.float32)
    beta = 0.1 * jax.random.normal(k_b, (COUT,), dtype=jnp.float32)
    running_mean = 0.1 * jax.random.normal(k_m, (COUT,), dtype=jnp.float32)
    running_var = jnp.abs(1.0 + 0.1 * jax.random.normal(k_v, (COUT,), dtype=jnp.float32))

    out = conv2d_bn_relu(x19, conv_weight, gamma, beta, running_mean, running_var, eps=1e-3)
    jax.block_until_ready(out)

    # Correctness check against a plain-JAX reference (eval-mode BN folding).
    scale = gamma / jnp.sqrt(running_var + 1e-3)
    bias = beta - running_mean * scale
    ref = jnp.einsum("nchw,oc->nohw", x19, conv_weight.reshape(COUT, CIN))
    ref = jnp.maximum(ref * scale[None, :, None, None] + bias[None, :, None, None], 0.0)
    assert out.shape == (N, COUT, H, W)
    assert jnp.allclose(out, ref, atol=1e-4, rtol=1e-4)

    print("KERNEL_OK")
</pallas_src>

<mosaic_0001>
module attributes {stable_mosaic.version = 11 : i64} {
  func.func @_conv_bn_relu_kernel(%arg0: i32, %arg1: i32, %arg2: memref<72x24xf32, #tpu.memory_space<vmem>>, %arg3: memref<72x1xf32, #tpu.memory_space<vmem>>, %arg4: memref<72x1xf32, #tpu.memory_space<vmem>>, %arg5: memref<1x24x1024xf32, #tpu.memory_space<vmem>>, %arg6: memref<1x72x1024xf32, #tpu.memory_space<vmem>>) attributes {dimension_semantics = [#tpu.dimension_semantics<parallel>, #tpu.dimension_semantics<parallel>], iteration_bounds = array<i64: 1, 4>, scalar_prefetch = 0 : i64, scratch_operands = 0 : i64, tpu.core_type = #tpu.core_type<tc>, window_params = [{pipeline_mode = #tpu.pipeline_mode<synchronous>, transform_indices = @transform_0, window_bounds = array<i64: 72, 24>}, {pipeline_mode = #tpu.pipeline_mode<synchronous>, transform_indices = @transform_1, window_bounds = array<i64: 72, 1>}, {pipeline_mode = #tpu.pipeline_mode<synchronous>, transform_indices = @transform_2, window_bounds = array<i64: 72, 1>}, {transform_indices = @transform_3, window_bounds = array<i64: 1, 24, 1024>}, {transform_indices = @transform_4, window_bounds = array<i64: 1, 72, 1024>}]} {
    %c0 = arith.constant 0 : index
    %c0_0 = arith.constant 0 : index
    %0 = vector.load %arg2[%c0, %c0_0] : memref<72x24xf32, #tpu.memory_space<vmem>>, vector<72x24xf32>
    %c0_1 = arith.constant 0 : index
    %c0_2 = arith.constant 0 : index
    %c0_3 = arith.constant 0 : index
    %1 = vector.load %arg5[%c0_1, %c0_2, %c0_3] : memref<1x24x1024xf32, #tpu.memory_space<vmem>>, vector<1x24x1024xf32>
    %2 = vector.shape_cast %1 : vector<1x24x1024xf32> to vector<24x1024xf32>
    %cst = arith.constant dense<0.000000e+00> : vector<72x1024xf32>
    %3 = tpu.matmul %0, %2, %cst {dimension_numbers = #tpu.dot_dimension_numbers<[1], [0], [0], [1], [0, 0, 1, 1], [], []>} : vector<72x24xf32>, vector<24x1024xf32>, vector<72x1024xf32> -> vector<72x1024xf32>
    %c0_4 = arith.constant 0 : index
    %c0_5 = arith.constant 0 : index
    %4 = vector.load %arg3[%c0_4, %c0_5] : memref<72x1xf32, #tpu.memory_space<vmem>>, vector<72x1xf32>
    %5 = vector.broadcast %4 : vector<72x1xf32> to vector<72x1024xf32>
    %6 = arith.mulf %3, %5 : vector<72x1024xf32>
    %c0_6 = arith.constant 0 : index
    %c0_7 = arith.constant 0 : index
    %7 = vector.load %arg4[%c0_6, %c0_7] : memref<72x1xf32, #tpu.memory_space<vmem>>, vector<72x1xf32>
    %8 = vector.broadcast %7 : vector<72x1xf32> to vector<72x1024xf32>
    %9 = arith.addf %6, %8 : vector<72x1024xf32>
    %cst_8 = arith.constant 0.000000e+00 : f32
    %10 = vector.broadcast %cst_8 : f32 to vector<72x1024xf32>
    %11 = arith.maximumf %9, %10 : vector<72x1024xf32>
    %c0_9 = arith.constant 0 : index
    %c0_10 = arith.constant 0 : index
    %c0_11 = arith.constant 0 : index
    %12 = vector.load %arg6[%c0_9, %c0_10, %c0_11] : memref<1x72x1024xf32, #tpu.memory_space<vmem>>, vector<1x72x1024xf32>
    %13 = vector.shape_cast %12 : vector<1x72x1024xf32> to vector<72x1024xf32>
    %14 = vector.shape_cast %11 : vector<72x1024xf32> to vector<1x72x1024xf32>
    tpu.vector_store %arg6[%c0_9, %c0_10, %c0_11], %14 {strides = array<i32>} : memref<1x72x1024xf32, #tpu.memory_space<vmem>>, vector<1x72x1024xf32>,
    return
  }
  func.func @transform_0(%arg0: i32, %arg1: i32) -> (i32, i32) {
    %c0_i32 = arith.constant 0 : i32
    %c0_i32_0 = arith.constant 0 : i32
    %c0_i32_1 = arith.constant 0 : i32
    return %c0_i32, %c0_i32_0 : i32, i32
  }
  func.func @transform_1(%arg0: i32, %arg1: i32) -> (i32, i32) {
    %c0_i32 = arith.constant 0 : i32
    %c0_i32_0 = arith.constant 0 : i32
    %c0_i32_1 = arith.constant 0 : i32
    return %c0_i32, %c0_i32_0 : i32, i32
  }
  func.func @transform_2(%arg0: i32, %arg1: i32) -> (i32, i32) {
    %c0_i32 = arith.constant 0 : i32
    %c0_i32_0 = arith.constant 0 : i32
    %c0_i32_1 = arith.constant 0 : i32
    return %c0_i32, %c0_i32_0 : i32, i32
  }
  func.func @transform_3(%arg0: i32, %arg1: i32) -> (i32, i32, i32) {
    %c0_i32 = arith.constant 0 : i32
    %c0_i32_0 = arith.constant 0 : i32
    return %arg0, %c0_i32, %arg1 : i32, i32, i32
  }
  func.func @transform_4(%arg0: i32, %arg1: i32) -> (i32, i32, i32) {
    %c0_i32 = arith.constant 0 : i32
    %c0_i32_0 = arith.constant 0 : i32
    return %arg0, %c0_i32, %arg1 : i32, i32, i32
  }
}

</mosaic_0001>

<llo_original>
// kernel: tpu_custom_call.1
$region0: #{tpu_custom_call.1}
  #allocation0 [shape = 'u32[]', space=smem, size = 0x4, offset = 0x4, fixed_abs, tag = 'smem constant byte address 0x4 - core index']
  #allocation1 [shape = 'u32[72,128]{1,0:T(1,128)}', space=vmem, size = 0x9000, scoped, tag = 'internal scratch']
  %s0 = inlined_call_operand.vmem [shape: f32[72,24], index: 0, kind: input, shape index: {}]
  %s1 = inlined_call_operand.vmem [shape: f32[72,1], index: 1, kind: input, shape index: {}]
  %s2 = inlined_call_operand.vmem [shape: f32[72,1], index: 2, kind: input, shape index: {}]
  %s3 = inlined_call_operand.hbm [shape: f32[1,24,3136], index: 3, kind: input, shape index: {}]
  %s4 = inlined_call_operand.hbm [shape: f32[1,72,3136], index: 4, kind: output, shape index: {}]
  %s5 = sld [smem:[#allocation0]]
  $region53: #{tpu_custom_call.1} parent=0
    _
  %s7 = ssub.s32 1, %s5
  %s8 = scalar_select 0, %s7, %s5
  $region1: #{tpu_custom_call.1} parent=0
    #allocation2 [shape = 'u8[196608]{0}', space=vmem, size = 0x30000, scoped, tag = 'input window, operand 3']
    #allocation3 [shape = 's32[2]{0}', space=sflag, size = 0x8, scoped, tag = 'scoped memory for tpu_custom_call.1']
    #allocation4 [shape = 's32[2]{0}', space=sflag, size = 0x8, scoped, tag = 'scoped memory for tpu_custom_call.1']
    #allocation5 [shape = 'u8[589824]{0}', space=vmem, size = 0x90000, scoped, tag = 'output window, operand 0']
    %9 = vsyncpa [#allocation3], 0
    %s10 = scalar_lea.sflag [#allocation3], 1
    %11 = vsyncpa %s10, 0
    %12 = vsyncpa [#allocation4], 0
    %s13 = scalar_lea.sflag [#allocation4], 1
    %14 = vsyncpa %s13, 0
    loop: start=0, step=1, limit=6
    $region2: #{tpu_custom_call.1} parent=1 // loop_pre_header
      _
    $region3: #{tpu_custom_call.1} parent=1 // loop_header
      %s16 = sphi 0, %s20
      %p17 = scmp.ge.s32.totalorder %s16, 6
      %s23 = sphi 0, %s35
      %s24 = sphi 0, %s31
      %s25 = sphi 0, %s23
      %s26 = sphi 0, %s24
      %s27 = sphi 0, %s25
      %s28 = sphi 0, %s26
      %s36 = sphi 0, %s36
      %s38 = sphi 0, %s36
      %s39 = sphi 0, %s38
      %s53 = sphi 0, %s39
      %s57 = sphi 0, %s57
      %s59 = sphi 0, %s57
      %s60 = sphi 0, %s59
      %s74 = sphi 0, %s60
      %s78 = sphi 0, %s78
      %s80 = sphi 0, %s78
      %s81 = sphi 0, %s80
      %s95 = sphi 0, %s81
      %s103 = sphi 0, %s105
      %s106 = sphi 0, %s103
      %s107 = sphi 0, %s106
      %s123 = sphi 0, %s107
      %s131 = sphi 0, %s133
      %s134 = sphi 0, %s131
      %s135 = sphi 0, %s134
      %s151 = sphi 0, %s135
    $region4: #{tpu_custom_call.1} parent=1 // loop_header_branch
      %19 = sbr.rel (%p17) target = $region8
    $region5: #{tpu_custom_call.1} parent=1 // loop_body
      %s21 = ssub.s32 %s16, 1
      %s22 = ssub.s32 %s16, 2
      %s29 = sadd.s32 1, %s24
      %p30 = scmp.ge.s32.totalorder %s29, 4
      %s31 = scalar_select %p30, 0, %s29
      %s32 = sadd.s32 1, %s23
      %s33 = scalar_select %p30, %s32, %s23
      %p34 = scmp.ge.s32.totalorder %s33, 1
      %s35 = scalar_select %p34, 0, %s33
      %s37 = sadd.s32 %s36, 1
      %p40 = scmp.eq.s32.totalorder %s16, 3
      %p41 = scmp.ne.s32.totalorder %s36, %s38
      %p42 = scmp.eq.s32.totalorder %s16, 0
      %p43 = por %p41, %p42
      %p44 = scmp.ne.s32.totalorder %s36, %s38
      %p45 = scmp.eq.s32.totalorder %s21, 3
      %p46 = por %p44, %p45
      %p47 = scmp.ne.s32.totalorder %s38, %s39
      %p48 = scmp.eq.s32.totalorder %s21, 0
      %p49 = por %p47, %p48
      %p50 = scmp.ne.s32.totalorder %s38, %s39
      %p51 = scmp.eq.s32.totalorder %s22, 3
      %p52 = por %p50, %p51
      %p54 = scmp.ne.s32.totalorder %s39, %s53
      %p55 = scmp.eq.s32.totalorder %s22, 0
      %p56 = por %p54, %p55
      %s58 = sadd.s32 %s57, 1
      %p61 = scmp.eq.s32.totalorder %s16, 3
      %p62 = scmp.ne.s32.totalorder %s57, %s59
      %p63 = scmp.eq.s32.totalorder %s16, 0
      %p64 = por %p62, %p63
      %p65 = scmp.ne.s32.totalorder %s57, %s59
      %p66 = scmp.eq.s32.totalorder %s21, 3
      %p67 = por %p65, %p66
      %p68 = scmp.ne.s32.totalorder %s59, %s60
      %p69 = scmp.eq.s32.totalorder %s21, 0
      %p70 = por %p68, %p69
      %p71 = scmp.ne.s32.totalorder %s59, %s60
      %p72 = scmp.eq.s32.totalorder %s22, 3
      %p73 = por %p71, %p72
      %p75 = scmp.ne.s32.totalorder %s60, %s74
      %p76 = scmp.eq.s32.totalorder %s22, 0
      %p77 = por %p75, %p76
      %s79 = sadd.s32 %s78, 1
      %p82 = scmp.eq.s32.totalorder %s16, 3
      %p83 = scmp.ne.s32.totalorder %s78, %s80
      %p84 = scmp.eq.s32.totalorder %s16, 0
      %p85 = por %p83, %p84
      %p86 = scmp.ne.s32.totalorder %s78, %s80
      %p87 = scmp.eq.s32.totalorder %s21, 3
      %p88 = por %p86, %p87
      %p89 = scmp.ne.s32.totalorder %s80, %s81
      %p90 = scmp.eq.s32.totalorder %s21, 0
      %p91 = por %p89, %p90
      %p92 = scmp.ne.s32.totalorder %s80, %s81
      %p93 = scmp.eq.s32.totalorder %s22, 3
      %p94 = por %p92, %p93
      %p96 = scmp.ne.s32.totalorder %s81, %s95
      %p97 = scmp.eq.s32.totalorder %s22, 0
      %p98 = por %p96, %p97
      %s99 = ssub.s32 %s23, %s35
      %s100 = ssub.s32 %s24, %s31
      %s101 = sor.u32 %s99, %s100
      %p102 = scmp.eq.s32.totalorder %s101, 0
      %s104 = sadd.s32 %s103, 1
      %s105 = scalar_select %p102, %s103, %s104
      %p108 = pneg %p102
      %p109 = scmp.eq.s32.totalorder %s16, 3
      %p110 = por %p108, %p109
      %p111 = scmp.ne.s32.totalorder %s103, %s106
      %p112 = scmp.eq.s32.totalorder %s16, 0
      %p113 = por %p111, %p112
      %p114 = scmp.ne.s32.totalorder %s103, %s106
      %p115 = scmp.eq.s32.totalorder %s21, 3
      %p116 = por %p114, %p115
      %p117 = scmp.ne.s32.totalorder %s106, %s107
      %p118 = scmp.eq.s32.totalorder %s21, 0
      %p119 = por %p117, %p118
      %p120 = scmp.ne.s32.totalorder %s106, %s107
      %p121 = scmp.eq.s32.totalorder %s22, 3
      %p122 = por %p120, %p121
      %p124 = scmp.ne.s32.totalorder %s107, %s123
      %p125 = scmp.eq.s32.totalorder %s22, 0
      %p126 = por %p124, %p125
      %s127 = ssub.s32 %s23, %s35
      %s128 = ssub.s32 %s24, %s31
      %s129 = sor.u32 %s127, %s128
      %p130 = scmp.eq.s32.totalorder %s129, 0
      %s132 = sadd.s32 %s131, 1
      %s133 = scalar_select %p130, %s131, %s132
      %p136 = pneg %p130
      %p137 = scmp.eq.s32.totalorder %s16, 3
      %p138 = por %p136, %p137
      %p139 = scmp.ne.s32.totalorder %s131, %s134
      %p140 = scmp.eq.s32.totalorder %s16, 0
      %p141 = por %p139, %p140
      %p142 = scmp.ne.s32.totalorder %s131, %s134
      %p143 = scmp.eq.s32.totalorder %s21, 3
      %p144 = por %p142, %p143
      %p145 = scmp.ne.s32.totalorder %s134, %s135
      %p146 = scmp.eq.s32.totalorder %s21, 0
      %p147 = por %p145, %p146
      %p148 = scmp.ne.s32.totalorder %s134, %s135
      %p149 = scmp.eq.s32.totalorder %s22, 3
      %p150 = por %p148, %p149
      %p152 = scmp.ne.s32.totalorder %s135, %s151
      %p153 = scmp.eq.s32.totalorder %s22, 0
      %p154 = por %p152, %p153
      %p155 = scmp.le.s32.totalorder 1, %s16
      %p156 = scmp.lt.s32.totalorder %s16, 5
      %p157 = pnand %p155, %p156
      %p158 = pneg %p157
      // Predicated region
      $region9: #{tpu_custom_call.1} parent=5 // pred_check
        _
      $region10: #{tpu_custom_call.1} parent=5 // pred_check_branch
        %160 = sbr.rel (%p157) target = $region12
      $region11: #{tpu_custom_call.1} parent=5 // pred_region
        %s161 = ssub.s32 %s16, 1
        // Predicated region
        $region13: #{tpu_custom_call.1} parent=11 // pred_check
          %p162 = pneg %p49
        $region14: #{tpu_custom_call.1} parent=11 // pred_check_branch
          %164 = sbr.rel (%p162) target = $region16
        $region15: #{tpu_custom_call.1} parent=11 // pred_region
          _
        $region16: #{tpu_custom_call.1} parent=11 // pred_fallthru
          _
        // Predicated region
        $region17: #{tpu_custom_call.1} parent=11 // pred_check
          %p165 = pneg %p70
        $region18: #{tpu_custom_call.1} parent=11 // pred_check_branch
          %167 = sbr.rel (%p165) target = $region20
        $region19: #{tpu_custom_call.1} parent=11 // pred_region
          _
        $region20: #{tpu_custom_call.1} parent=11 // pred_fallthru
          _
        // Predicated region
        $region21: #{tpu_custom_call.1} parent=11 // pred_check
          %p168 = pneg %p91
        $region22: #{tpu_custom_call.1} parent=11 // pred_check_branch
          %170 = sbr.rel (%p168) target = $region24
        $region23: #{tpu_custom_call.1} parent=11 // pred_region
          _
        $region24: #{tpu_custom_call.1} parent=11 // pred_fallthru
          _
      $region12: #{tpu_custom_call.1} parent=5 // pred_fallthru
        _
      %p171 = scmp.lt.s32.totalorder %s16, 4
      // Predicated region
      $region25: #{tpu_custom_call.1} parent=5 // pred_check
        %p172 = pneg %p171
      $region26: #{tpu_custom_call.1} parent=5 // pred_check_branch
        %174 = sbr.rel (%p172) target = $region28
      $region27: #{tpu_custom_call.1} parent=5 // pred_region
        // Predicated region
        $region29: #{tpu_custom_call.1} parent=27 // pred_check
          %p175 = pneg %p113
        $region30: #{tpu_custom_call.1} parent=27 // pred_check_branch
          %177 = sbr.rel (%p175) target = $region32
        $region31: #{tpu_custom_call.1} parent=27 // pred_region
          %s178 = sand.u32 %s103, 1
          %s179 = scalar_lea.sflag [#allocation3], %s178
          %s180 = sand.u32 %s103, 1
          %s181 = smul.addr %s180, 192
          %s182 = scalar_lea.vmem [#allocation2], %s181
          %s183 = smul.u32 8, %s24
          %s184 = ssub.s32 25, %s183
          %p185 = scmp.lt.s32.totalorder %s184, 8
          %s186 = scalar_select %p185, %s184, 8
          %s187 = smul.u32 24, %s186
          %s188 = ssub.s32 192, %s187
          %s189 = sshll.u32 %s188, 4
          %190 = vsyncadd %s179, %s189
          %p191 = scmp.ne.s32.totalorder 0, %s187
          %s192 = smul.addr %s23, 75
          %s193 = sadd.s32 %s183, %s192
          %s194 = smul.addr %s193, 8
          %s195 = scalar_lea.hbm %s3, %s194
          %s196 = smul.u32 %s186, 8
          %s197 = smul.u32 %s196, 3
          %s198 = sshll.u32 %s195, 4
          %s199 = int_to_ptr.hbm [resolvable:$true] %s198
          %s200 = sshll.u32 %s182, 4
          %s201 = int_to_ptr.vmem [resolvable:$true] %s200
          %s202 = sshll.u32 %s197, 4
          %206 = dma.hbm_to_vmem [thread:$0]  (%p191), %s199, %s202, %s201, %s179, 3200, 1024, %s196
        $region32: #{tpu_custom_call.1} parent=27 // pred_fallthru
          _
      $region28: #{tpu_custom_call.1} parent=5 // pred_fallthru
        _
      %p207 = scmp.le.s32.totalorder 1, %s16
      %p208 = scmp.lt.s32.totalorder %s16, 5
      %p209 = pnand %p207, %p208
      %p210 = pneg %p209
      // Predicated region
      $region33: #{tpu_custom_call.1} parent=5 // pred_check
        _
      $region34: #{tpu_custom_call.1} parent=5 // pred_check_branch
        %212 = sbr.rel (%p209) target = $region36
      $region35: #{tpu_custom_call.1} parent=5 // pred_region
        %s213 = ssub.s32 %s16, 1
        %s214 = sand.u32 %s106, 1
        %s215 = scalar_lea.sflag [#allocation3], %s214
        %s216 = sand.u32 %s106, 1
        %s217 = smul.addr %s216, 192
        %s218 = scalar_lea.vmem [#allocation2], %s217
        // Predicated region
        $region37: #{tpu_custom_call.1} parent=35 // pred_check
          %p219 = pneg %p119
        $region38: #{tpu_custom_call.1} parent=35 // pred_check_branch
          %221 = sbr.rel (%p219) target = $region40
        $region39: #{tpu_custom_call.1} parent=35 // pred_region
          %223 = dma.done %s215, 3072
        $region40: #{tpu_custom_call.1} parent=35 // pred_fallthru
          _
        %p224 = pneg %p49
        %p225 = pneg %p46
        %p226 = pneg %p70
        %p227 = pneg %p67
        %p228 = pneg %p91
        %p229 = pneg %p88
        %s230 = sand.u32 %s106, 1
        %s231 = scalar_lea.sflag [#allocation3], %s230
        %s232 = sand.u32 %s106, 1
        %s233 = smul.addr %s232, 192
        %s234 = scalar_lea.vmem [#allocation2], %s233
        %p235 = pneg %p119
        %p236 = pneg %p116
        %p237 = pneg %p147
        %p238 = pneg %p144
        %s239 = sand.u32 %s134, 1
        %s240 = scalar_lea.sflag [#allocation4], %s239
        %s241 = sand.u32 %s134, 1
        %s242 = smul.addr %s241, 576
        %s243 = scalar_lea.vmem [#allocation5], %s242
        %s244 = smul.u32 8, %s26
        %s245 = ssub.s32 25, %s244
        %p246 = scmp.lt.s32.totalorder %s245, 8
        %s247 = scalar_select %p246, %s245, 8
        %s248 = smul.u32 24, %s247
        %s249 = smul.u32 8, %s26
        %s250 = ssub.s32 25, %s249
        %p251 = scmp.lt.s32.totalorder %s250, 8
        %s252 = scalar_select %p251, %s250, 8
        %s253 = smul.u32 72, %s252
        %v254 = vld [vmem:[%s0] sm:$0xff]
        %v255 = vld [vmem:[%s0 + $0x8] sm:$0xff]
        %v256 = vld [vmem:[%s0 + $0x10] sm:$0xff]
        %v257 = vld [vmem:[%s0 + $0x18] sm:$0xff]
        %v258 = vld [vmem:[%s0 + $0x20] sm:$0xff]
        %v259 = vld [vmem:[%s0 + $0x28] sm:$0xff]
        %v260 = vld [vmem:[%s0 + $0x30] sm:$0xff]
        %v261 = vld [vmem:[%s0 + $0x38] sm:$0xff]
        %v262 = vld [vmem:[%s0 + $0x40] sm:$0xff]
        %v263 = vld [vmem:[%s218] sm:$0xff]
        %v264 = vld [vmem:[%s218 + $0x8] sm:$0xff]
        %v265 = vld [vmem:[%s218 + $0x10] sm:$0xff]
        %v266 = vld [vmem:[%s218 + $0x18] sm:$0xff]
        %v267 = vld [vmem:[%s218 + $0x20] sm:$0xff]
        %v268 = vld [vmem:[%s218 + $0x28] sm:$0xff]
        %v269 = vld [vmem:[%s218 + $0x30] sm:$0xff]
        %v270 = vld [vmem:[%s218 + $0x38] sm:$0xff]
        %v271 = vld [vmem:[%s218 + $0x40] sm:$0xff]
        %v272 = vld [vmem:[%s218 + $0x48] sm:$0xff]
        %v273 = vld [vmem:[%s218 + $0x50] sm:$0xff]
        %v274 = vld [vmem:[%s218 + $0x58] sm:$0xff]
        %v275 = vld [vmem:[%s218 + $0x60] sm:$0xff]
        %v276 = vld [vmem:[%s218 + $0x68] sm:$0xff]
        %v277 = vld [vmem:[%s218 + $0x70] sm:$0xff]
        %v278 = vld [vmem:[%s218 + $0x78] sm:$0xff]
        %v279 = vld [vmem:[%s218 + $0x80] sm:$0xff]
        %v280 = vld [vmem:[%s218 + $0x88] sm:$0xff]
        %v281 = vld [vmem:[%s218 + $0x90] sm:$0xff]
        %v282 = vld [vmem:[%s218 + $0x98] sm:$0xff]
        %v283 = vld [vmem:[%s218 + $0xa0] sm:$0xff]
        %v284 = vld [vmem:[%s218 + $0xa8] sm:$0xff]
        %v285 = vld [vmem:[%s218 + $0xb0] sm:$0xff]
        %v286 = vld [vmem:[%s218 + $0xb8] sm:$0xff]
        %vm287 = vcmask 195584
        %v289 = vsel %vm287, %v254, 0
        %v292 = vsel %vm287, %v255, 0
        %v295 = vsel %vm287, %v256, 0
        %v298 = vsel %vm287, %v257, 0
        %v301 = vsel %vm287, %v258, 0
        %v304 = vsel %vm287, %v259, 0
        %v307 = vsel %vm287, %v260, 0
        %v310 = vsel %vm287, %v261, 0
        %v313 = vsel %vm287, %v262, 0
        %315 = vmatpush.msra.mxu0 0.0
        %316 = vmatpush.msra.mxu0 0.0
        %317 = vmatpush.msra.mxu0 0.0
        %318 = vmatpush.msra.mxu0 0.0
        %319 = vmatpush.msra.mxu0 0.0
        %320 = vmatpush.msra.mxu0 0.0
        %321 = vmatpush.msra.mxu0 0.0
        %322 = vmatpush.msra.mxu0 0.0
        %323 = vmatpush.msra.mxu0 0.0
        %324 = vmatpush.msra.mxu0 0.0
        %325 = vmatpush.msra.mxu0 0.0
        %326 = vmatpush.msra.mxu0 0.0
        %327 = vmatpush.msra.mxu0 0.0
        %328 = vmatpush.msra.mxu0 %v279
        %329 = vmatpush.msra.mxu0 %v271
        %330 = vmatpush.msra.mxu0 %v263
        %331 = vmatmul.f32.gmra.mxu0 %v289
        %v332 = vpop.f32.mrf.mxu0
        %v333 = vadd.f32 0.0, %v332
        %334 = vmatmul.f32.gmra.mxu0 %v292
        %v335 = vpop.f32.mrf.mxu0
        %v336 = vadd.f32 0.0, %v335
        %337 = vmatmul.f32.gmra.mxu0 %v295
        %v338 = vpop.f32.mrf.mxu0
        %v339 = vadd.f32 0.0, %v338
        %340 = vmatmul.f32.gmra.mxu0 %v298
        %v341 = vpop.f32.mrf.mxu0
        %v342 = vadd.f32 0.0, %v341
        %343 = vmatmul.f32.gmra.mxu0 %v301
        %v344 = vpop.f32.mrf.mxu0
        %v345 = vadd.f32 0.0, %v344
        %346 = vmatmul.f32.gmra.mxu0 %v304
        %v347 = vpop.f32.mrf.mxu0
        %v348 = vadd.f32 0.0, %v347
        %349 = vmatmul.f32.gmra.mxu0 %v307
        %v350 = vpop.f32.mrf.mxu0
        %v351 = vadd.f32 0.0, %v350
        %352 = vmatmul.f32.gmra.mxu0 %v310
        %v353 = vpop.f32.mrf.mxu0
        %v354 = vadd.f32 0.0, %v353
        %355 = vmatmul.f32.gmra.mxu0 %v313
        %v356 = vpop.f32.mrf.mxu0
        %v357 = vadd.f32 0.0, %v356
        %358 = vdwg.mxu0
        %359 = vmatpush.msra.mxu0 0.0
        %360 = vmatpush.msra.mxu0 0.0
        %361 = vmatpush.msra.mxu0 0.0
        %362 = vmatpush.msra.mxu0 0.0
        %363 = vmatpush.msra.mxu0 0.0
        %364 = vmatpush.msra.mxu0 0.0
        %365 = vmatpush.msra.mxu0 0.0
        %366 = vmatpush.msra.mxu0 0.0
        %367 = vmatpush.msra.mxu0 0.0
        %368 = vmatpush.msra.mxu0 0.0
        %369 = vmatpush.msra.mxu0 0.0
        %370 = vmatpush.msra.mxu0 0.0
        %371 = vmatpush.msra.mxu0 0.0
        %372 = vmatpush.msra.mxu0 %v280
        %373 = vmatpush.msra.mxu0 %v272
        %374 = vmatpush.msra.mxu0 %v264
        %375 = vmatmul.f32.gmra.mxu0 %v289
        %v376 = vpop.f32.mrf.mxu0
        %v377 = vadd.f32 0.0, %v376
        %378 = vmatmul.f32.gmra.mxu0 %v292
        %v379 = vpop.f32.mrf.mxu0
        %v380 = vadd.f32 0.0, %v379
        %381 = vmatmul.f32.gmra.mxu0 %v295
        %v382 = vpop.f32.mrf.mxu0
        %v383 = vadd.f32 0.0, %v382
        %384 = vmatmul.f32.gmra.mxu0 %v298
        %v385 = vpop.f32.mrf.mxu0
        %v386 = vadd.f32 0.0, %v385
        %387 = vmatmul.f32.gmra.mxu0 %v301
        %v388 = vpop.f32.mrf.mxu0
        %v389 = vadd.f32 0.0, %v388
        %390 = vmatmul.f32.gmra.mxu0 %v304
        %v391 = vpop.f32.mrf.mxu0
        %v392 = vadd.f32 0.0, %v391
        %393 = vmatmul.f32.gmra.mxu0 %v307
        %v394 = vpop.f32.mrf.mxu0
        %v395 = vadd.f32 0.0, %v394
        %396 = vmatmul.f32.gmra.mxu0 %v310
        %v397 = vpop.f32.mrf.mxu0
        %v398 = vadd.f32 0.0, %v397
        %399 = vmatmul.f32.gmra.mxu0 %v313
        %v400 = vpop.f32.mrf.mxu0
        %v401 = vadd.f32 0.0, %v400
        %402 = vdwg.mxu0
        %403 = vmatpush.msra.mxu0 0.0
        %404 = vmatpush.msra.mxu0 0.0
        %405 = vmatpush.msra.mxu0 0.0
        %406 = vmatpush.msra.mxu0 0.0
        %407 = vmatpush.msra.mxu0 0.0
        %408 = vmatpush.msra.mxu0 0.0
        %409 = vmatpush.msra.mxu0 0.0
        %410 = vmatpush.msra.mxu0 0.0
        %411 = vmatpush.msra.mxu0 0.0
        %412 = vmatpush.msra.mxu0 0.0
        %413 = vmatpush.msra.mxu0 0.0
        %414 = vmatpush.msra.mxu0 0.0
        %415 = vmatpush.msra.mxu0 0.0
        %416 = vmatpush.msra.mxu0 %v281
        %417 = vmatpush.msra.mxu0 %v273
        %418 = vmatpush.msra.mxu0 %v265
        %419 = vmatmul.f32.gmra.mxu0 %v289
        %v420 = vpop.f32.mrf.mxu0
        %v421 = vadd.f32 0.0, %v420
        %422 = vmatmul.f32.gmra.mxu0 %v292
        %v423 = vpop.f32.mrf.mxu0
        %v424 = vadd.f32 0.0, %v423
        %425 = vmatmul.f32.gmra.mxu0 %v295
        %v426 = vpop.f32.mrf.mxu0
        %v427 = vadd.f32 0.0, %v426
        %428 = vmatmul.f32.gmra.mxu0 %v298
        %v429 = vpop.f32.mrf.mxu0
        %v430 = vadd.f32 0.0, %v429
        %431 = vmatmul.f32.gmra.mxu0 %v301
        %v432 = vpop.f32.mrf.mxu0
        %v433 = vadd.f32 0.0, %v432
        %434 = vmatmul.f32.gmra.mxu0 %v304
        %v435 = vpop.f32.mrf.mxu0
        %v436 = vadd.f32 0.0, %v435
        %437 = vmatmul.f32.gmra.mxu0 %v307
        %v438 = vpop.f32.mrf.mxu0
        %v439 = vadd.f32 0.0, %v438
        %440 = vmatmul.f32.gmra.mxu0 %v310
        %v441 = vpop.f32.mrf.mxu0
        %v442 = vadd.f32 0.0, %v441
        %443 = vmatmul.f32.gmra.mxu0 %v313
        %v444 = vpop.f32.mrf.mxu0
        %v445 = vadd.f32 0.0, %v444
        %446 = vdwg.mxu0
        %447 = vmatpush.msra.mxu0 0.0
        %448 = vmatpush.msra.mxu0 0.0
        %449 = vmatpush.msra.mxu0 0.0
        %450 = vmatpush.msra.mxu0 0.0
        %451 = vmatpush.msra.mxu0 0.0
        %452 = vmatpush.msra.mxu0 0.0
        %453 = vmatpush.msra.mxu0 0.0
        %454 = vmatpush.msra.mxu0 0.0
        %455 = vmatpush.msra.mxu0 0.0
        %456 = vmatpush.msra.mxu0 0.0
        %457 = vmatpush.msra.mxu0 0.0
        %458 = vmatpush.msra.mxu0 0.0
        %459 = vmatpush.msra.mxu0 0.0
        %460 = vmatpush.msra.mxu0 %v282
        %461 = vmatpush.msra.mxu0 %v274
        %462 = vmatpush.msra.mxu0 %v266
        %463 = vmatmul.f32.gmra.mxu0 %v289
        %v464 = vpop.f32.mrf.mxu0
        %v465 = vadd.f32 0.0, %v464
        %466 = vmatmul.f32.gmra.mxu0 %v292
        %v467 = vpop.f32.mrf.mxu0
        %v468 = vadd.f32 0.0, %v467
        %469 = vmatmul.f32.gmra.mxu0 %v295
        %v470 = vpop.f32.mrf.mxu0
        %v471 = vadd.f32 0.0, %v470
        %472 = vmatmul.f32.gmra.mxu0 %v298
        %v473 = vpop.f32.mrf.mxu0
        %v474 = vadd.f32 0.0, %v473
        %475 = vmatmul.f32.gmra.mxu0 %v301
        %v476 = vpop.f32.mrf.mxu0
        %v477 = vadd.f32 0.0, %v476
        %478 = vmatmul.f32.gmra.mxu0 %v304
        %v479 = vpop.f32.mrf.mxu0
        %v480 = vadd.f32 0.0, %v479
        %481 = vmatmul.f32.gmra.mxu0 %v307
        %v482 = vpop.f32.mrf.mxu0
        %v483 = vadd.f32 0.0, %v482
        %484 = vmatmul.f32.gmra.mxu0 %v310
        %v485 = vpop.f32.mrf.mxu0
        %v486 = vadd.f32 0.0, %v485
        %487 = vmatmul.f32.gmra.mxu0 %v313
        %v488 = vpop.f32.mrf.mxu0
        %v489 = vadd.f32 0.0, %v488
        %490 = vdwg.mxu0
        %491 = vmatpush.msra.mxu0 0.0
        %492 = vmatpush.msra.mxu0 0.0
        %493 = vmatpush.msra.mxu0 0.0
        %494 = vmatpush.msra.mxu0 0.0
        %495 = vmatpush.msra.mxu0 0.0
        %496 = vmatpush.msra.mxu0 0.0
        %497 = vmatpush.msra.mxu0 0.0
        %498 = vmatpush.msra.mxu0 0.0
        %499 = vmatpush.msra.mxu0 0.0
        %500 = vmatpush.msra.mxu0 0.0
        %501 = vmatpush.msra.mxu0 0.0
        %502 = vmatpush.msra.mxu0 0.0
        %503 = vmatpush.msra.mxu0 0.0
        %504 = vmatpush.msra.mxu0 %v283
        %505 = vmatpush.msra.mxu0 %v275
        %506 = vmatpush.msra.mxu0 %v267
        %507 = vmatmul.f32.gmra.mxu0 %v289
        %v508 = vpop.f32.mrf.mxu0
        %v509 = vadd.f32 0.0, %v508
        %510 = vmatmul.f32.gmra.mxu0 %v292
        %v511 = vpop.f32.mrf.mxu0
        %v512 = vadd.f32 0.0, %v511
        %513 = vmatmul.f32.gmra.mxu0 %v295
        %v514 = vpop.f32.mrf.mxu0
        %v515 = vadd.f32 0.0, %v514
        %516 = vmatmul.f32.gmra.mxu0 %v298
        %v517 = vpop.f32.mrf.mxu0
        %v518 = vadd.f32 0.0, %v517
        %519 = vmatmul.f32.gmra.mxu0 %v301
        %v520 = vpop.f32.mrf.mxu0
        %v521 = vadd.f32 0.0, %v520
        %522 = vmatmul.f32.gmra.mxu0 %v304
        %v523 = vpop.f32.mrf.mxu0
        %v524 = vadd.f32 0.0, %v523
        %525 = vmatmul.f32.gmra.mxu0 %v307
        %v526 = vpop.f32.mrf.mxu0
        %v527 = vadd.f32 0.0, %v526
        %528 = vmatmul.f32.gmra.mxu0 %v310
        %v529 = vpop.f32.mrf.mxu0
        %v530 = vadd.f32 0.0, %v529
        %531 = vmatmul.f32.gmra.mxu0 %v313
        %v532 = vpop.f32.mrf.mxu0
        %v533 = vadd.f32 0.0, %v532
        %534 = vdwg.mxu0
        %535 = vmatpush.msra.mxu0 0.0
        %536 = vmatpush.msra.mxu0 0.0
        %537 = vmatpush.msra.mxu0 0.0
        %538 = vmatpush.msra.mxu0 0.0
        %539 = vmatpush.msra.mxu0 0.0
        %540 = vmatpush.msra.mxu0 0.0
        %541 = vmatpush.msra.mxu0 0.0
        %542 = vmatpush.msra.mxu0 0.0
        %543 = vmatpush.msra.mxu0 0.0
        %544 = vmatpush.msra.mxu0 0.0
        %545 = vmatpush.msra.mxu0 0.0
        %546 = vmatpush.msra.mxu0 0.0
        %547 = vmatpush.msra.mxu0 0.0
        %548 = vmatpush.msra.mxu0 %v284
        %549 = vmatpush.msra.mxu0 %v276
        %550 = vmatpush.msra.mxu0 %v268
        %551 = vmatmul.f32.gmra.mxu0 %v289
        %v552 = vpop.f32.mrf.mxu0
        %v553 = vadd.f32 0.0, %v552
        %554 = vmatmul.f32.gmra.mxu0 %v292
        %v555 = vpop.f32.mrf.mxu0
        %v556 = vadd.f32 0.0, %v555
        %557 = vmatmul.f32.gmra.mxu0 %v295
        %v558 = vpop.f32.mrf.mxu0
        %v559 = vadd.f32 0.0, %v558
        %560 = vmatmul.f32.gmra.mxu0 %v298
        %v561 = vpop.f32.mrf.mxu0
        %v562 = vadd.f32 0.0, %v561
        %563 = vmatmul.f32.gmra.mxu0 %v301
        %v564 = vpop.f32.mrf.mxu0
        %v565 = vadd.f32 0.0, %v564
        %566 = vmatmul.f32.gmra.mxu0 %v304
        %v567 = vpop.f32.mrf.mxu0
        %v568 = vadd.f32 0.0, %v567
        %569 = vmatmul.f32.gmra.mxu0 %v307
        %v570 = vpop.f32.mrf.mxu0
        %v571 = vadd.f32 0.0, %v570
        %572 = vmatmul.f32.gmra.mxu0 %v310
        %v573 = vpop.f32.mrf.mxu0
        %v574 = vadd.f32 0.0, %v573
        %575 = vmatmul.f32.gmra.mxu0 %v313
        %v576 = vpop.f32.mrf.mxu0
        %v577 = vadd.f32 0.0, %v576
        %578 = vdwg.mxu0
        %579 = vmatpush.msra.mxu0 0.0
        %580 = vmatpush.msra.mxu0 0.0
        %581 = vmatpush.msra.mxu0 0.0
        %582 = vmatpush.msra.mxu0 0.0
        %583 = vmatpush.msra.mxu0 0.0
        %584 = vmatpush.msra.mxu0 0.0
        %585 = vmatpush.msra.mxu0 0.0
        %586 = vmatpush.msra.mxu0 0.0
        %587 = vmatpush.msra.mxu0 0.0
        %588 = vmatpush.msra.mxu0 0.0
        %589 = vmatpush.msra.mxu0 0.0
        %590 = vmatpush.msra.mxu0 0.0
        %591 = vmatpush.msra.mxu0 0.0
        %592 = vmatpush.msra.mxu0 %v285
        %593 = vmatpush.msra.mxu0 %v277
        %594 = vmatpush.msra.mxu0 %v269
        %595 = vmatmul.f32.gmra.mxu0 %v289
        %v596 = vpop.f32.mrf.mxu0
        %v597 = vadd.f32 0.0, %v596
        %598 = vmatmul.f32.gmra.mxu0 %v292
        %v599 = vpop.f32.mrf.mxu0
        %v600 = vadd.f32 0.0, %v599
        %601 = vmatmul.f32.gmra.mxu0 %v295
        %v602 = vpop.f32.mrf.mxu0
        %v603 = vadd.f32 0.0, %v602
        %604 = vmatmul.f32.gmra.mxu0 %v298
        %v605 = vpop.f32.mrf.mxu0
        %v606 = vadd.f32 0.0, %v605
        %607 = vmatmul.f32.gmra.mxu0 %v301
        %v608 = vpop.f32.mrf.mxu0
        %v609 = vadd.f32 0.0, %v608
        %610 = vmatmul.f32.gmra.mxu0 %v304
        %v611 = vpop.f32.mrf.mxu0
        %v612 = vadd.f32 0.0, %v611
        %613 = vmatmul.f32.gmra.mxu0 %v307
        %v614 = vpop.f32.mrf.mxu0
        %v615 = vadd.f32 0.0, %v614
        %616 = vmatmul.f32.gmra.mxu0 %v310
        %v617 = vpop.f32.mrf.mxu0
        %v618 = vadd.f32 0.0, %v617
        %619 = vmatmul.f32.gmra.mxu0 %v313
        %v620 = vpop.f32.mrf.mxu0
        %v621 = vadd.f32 0.0, %v620
        %622 = vdwg.mxu0
        %623 = vmatpush.msra.mxu0 0.0
        %624 = vmatpush.msra.mxu0 0.0
        %625 = vmatpush.msra.mxu0 0.0
        %626 = vmatpush.msra.mxu0 0.0
        %627 = vmatpush.msra.mxu0 0.0
        %628 = vmatpush.msra.mxu0 0.0
        %629 = vmatpush.msra.mxu0 0.0
        %630 = vmatpush.msra.mxu0 0.0
        %631 = vmatpush.msra.mxu0 0.0
        %632 = vmatpush.msra.mxu0 0.0
        %633 = vmatpush.msra.mxu0 0.0
        %634 = vmatpush.msra.mxu0 0.0
        %635 = vmatpush.msra.mxu0 0.0
        %636 = vmatpush.msra.mxu0 %v286
        %637 = vmatpush.msra.mxu0 %v278
        %638 = vmatpush.msra.mxu0 %v270
        %639 = vmatmul.f32.gmra.mxu0 %v289
        %v640 = vpop.f32.mrf.mxu0
        %v641 = vadd.f32 0.0, %v640
        %642 = vmatmul.f32.gmra.mxu0 %v292
        %v643 = vpop.f32.mrf.mxu0
        %v644 = vadd.f32 0.0, %v643
        %645 = vmatmul.f32.gmra.mxu0 %v295
        %v646 = vpop.f32.mrf.mxu0
        %v647 = vadd.f32 0.0, %v646
        %648 = vmatmul.f32.gmra.mxu0 %v298
        %v649 = vpop.f32.mrf.mxu0
        %v650 = vadd.f32 0.0, %v649
        %651 = vmatmul.f32.gmra.mxu0 %v301
        %v652 = vpop.f32.mrf.mxu0
        %v653 = vadd.f32 0.0, %v652
        %654 = vmatmul.f32.gmra.mxu0 %v304
        %v655 = vpop.f32.mrf.mxu0
        %v656 = vadd.f32 0.0, %v655
        %657 = vmatmul.f32.gmra.mxu0 %v307
        %v658 = vpop.f32.mrf.mxu0
        %v659 = vadd.f32 0.0, %v658
        %660 = vmatmul.f32.gmra.mxu0 %v310
        %v661 = vpop.f32.mrf.mxu0
        %v662 = vadd.f32 0.0, %v661
        %663 = vmatmul.f32.gmra.mxu0 %v313
        %v664 = vpop.f32.mrf.mxu0
        %v665 = vadd.f32 0.0, %v664
        %666 = vdwg.mxu0
        %v667 = vld [vmem:[%s1] sm:$0xff]
        %v668 = vld [vmem:[%s1 + $0x8] sm:$0xff]
        %v669 = vld [vmem:[%s1 + $0x10] sm:$0xff]
        %v670 = vld [vmem:[%s1 + $0x18] sm:$0xff]
        %v671 = vld [vmem:[%s1 + $0x20] sm:$0xff]
        %v672 = vld [vmem:[%s1 + $0x28] sm:$0xff]
        %v673 = vld [vmem:[%s1 + $0x30] sm:$0xff]
        %v674 = vld [vmem:[%s1 + $0x38] sm:$0xff]
        %v675 = vld [vmem:[%s1 + $0x40] sm:$0xff]
        %677 = vset.pattern.permute.xlu0 0
        %678 = vperm.xlu0 %677, %v667
        %v679 = vpop.permute.xlu0 %678
        %682 = vset.pattern.permute.xlu0 0
        %683 = vperm.xlu0 %682, %v668
        %v684 = vpop.permute.xlu0 %683
        %687 = vset.pattern.permute.xlu0 0
        %688 = vperm.xlu0 %687, %v669
        %v689 = vpop.permute.xlu0 %688
        %692 = vset.pattern.permute.xlu0 0
        %693 = vperm.xlu0 %692, %v670
        %v694 = vpop.permute.xlu0 %693
        %697 = vset.pattern.permute.xlu0 0
        %698 = vperm.xlu0 %697, %v671
        %v699 = vpop.permute.xlu0 %698
        %702 = vset.pattern.permute.xlu0 0
        %703 = vperm.xlu0 %702, %v672
        %v704 = vpop.permute.xlu0 %703
        %707 = vset.pattern.permute.xlu0 0
        %708 = vperm.xlu0 %707, %v673
        %v709 = vpop.permute.xlu0 %708
        %712 = vset.pattern.permute.xlu0 0
        %713 = vperm.xlu0 %712, %v674
        %v714 = vpop.permute.xlu0 %713
        %717 = vset.pattern.permute.xlu0 0
        %718 = vperm.xlu0 %717, %v675
        %v719 = vpop.permute.xlu0 %718
        %v721 = vmul.f32 %v333, %v679
        %v722 = vmul.f32 %v377, %v679
        %v723 = vmul.f32 %v421, %v679
        %v724 = vmul.f32 %v465, %v679
        %v725 = vmul.f32 %v509, %v679
        %v726 = vmul.f32 %v553, %v679
        %v727 = vmul.f32 %v597, %v679
        %v728 = vmul.f32 %v641, %v679
        %v729 = vmul.f32 %v336, %v684
        %v730 = vmul.f32 %v380, %v684
        %v731 = vmul.f32 %v424, %v684
        %v732 = vmul.f32 %v468, %v684
        %v733 = vmul.f32 %v512, %v684
        %v734 = vmul.f32 %v556, %v684
        %v735 = vmul.f32 %v600, %v684
        %v736 = vmul.f32 %v644, %v684
        %v737 = vmul.f32 %v339, %v689
        %v738 = vmul.f32 %v383, %v689
        %v739 = vmul.f32 %v427, %v689
        %v740 = vmul.f32 %v471, %v689
        %v741 = vmul.f32 %v515, %v689
        %v742 = vmul.f32 %v559, %v689
        %v743 = vmul.f32 %v603, %v689
        %v744 = vmul.f32 %v647, %v689
        %v745 = vmul.f32 %v342, %v694
        %v746 = vmul.f32 %v386, %v694
        %v747 = vmul.f32 %v430, %v694
        %v748 = vmul.f32 %v474, %v694
        %v749 = vmul.f32 %v518, %v694
        %v750 = vmul.f32 %v562, %v694
        %v751 = vmul.f32 %v606, %v694
        %v752 = vmul.f32 %v650, %v694
        %v753 = vmul.f32 %v345, %v699
        %v754 = vmul.f32 %v389, %v699
        %v755 = vmul.f32 %v433, %v699
        %v756 = vmul.f32 %v477, %v699
        %v757 = vmul.f32 %v521, %v699
        %v758 = vmul.f32 %v565, %v699
        %v759 = vmul.f32 %v609, %v699
        %v760 = vmul.f32 %v653, %v699
        %v761 = vmul.f32 %v348, %v704
        %v762 = vmul.f32 %v392, %v704
        %v763 = vmul.f32 %v436, %v704
        %v764 = vmul.f32 %v480, %v704
        %v765 = vmul.f32 %v524, %v704
        %v766 = vmul.f32 %v568, %v704
        %v767 = vmul.f32 %v612, %v704
        %v768 = vmul.f32 %v656, %v704
        %v769 = vmul.f32 %v351, %v709
        %v770 = vmul.f32 %v395, %v709
        %v771 = vmul.f32 %v439, %v709
        %v772 = vmul.f32 %v483, %v709
        %v773 = vmul.f32 %v527, %v709
        %v774 = vmul.f32 %v571, %v709
        %v775 = vmul.f32 %v615, %v709
        %v776 = vmul.f32 %v659, %v709
        %v777 = vmul.f32 %v354, %v714
        %v778 = vmul.f32 %v398, %v714
        %v779 = vmul.f32 %v442, %v714
        %v780 = vmul.f32 %v486, %v714
        %v781 = vmul.f32 %v530, %v714
        %v782 = vmul.f32 %v574, %v714
        %v783 = vmul.f32 %v618, %v714
        %v784 = vmul.f32 %v662, %v714
        %v785 = vmul.f32 %v357, %v719
        %v786 = vmul.f32 %v401, %v719
        %v787 = vmul.f32 %v445, %v719
        %v788 = vmul.f32 %v489, %v719
        %v789 = vmul.f32 %v533, %v719
        %v790 = vmul.f32 %v577, %v719
        %v791 = vmul.f32 %v621, %v719
        %v792 = vmul.f32 %v665, %v719
        %v793 = vld [vmem:[%s2] sm:$0xff]
        %v794 = vld [vmem:[%s2 + $0x8] sm:$0xff]
        %v795 = vld [vmem:[%s2 + $0x10] sm:$0xff]
        %v796 = vld [vmem:[%s2 + $0x18] sm:$0xff]
        %v797 = vld [vmem:[%s2 + $0x20] sm:$0xff]
        %v798 = vld [vmem:[%s2 + $0x28] sm:$0xff]
        %v799 = vld [vmem:[%s2 + $0x30] sm:$0xff]
        %v800 = vld [vmem:[%s2 + $0x38] sm:$0xff]
        %v801 = vld [vmem:[%s2 + $0x40] sm:$0xff]
        %803 = vset.pattern.permute.xlu0 0
        %804 = vperm.xlu0 %803, %v793
        %v805 = vpop.permute.xlu0 %804
        %808 = vset.pattern.permute.xlu0 0
        %809 = vperm.xlu0 %808, %v794
        %v810 = vpop.permute.xlu0 %809
        %813 = vset.pattern.permute.xlu0 0
        %814 = vperm.xlu0 %813, %v795
        %v815 = vpop.permute.xlu0 %814
        %818 = vset.pattern.permute.xlu0 0
        %819 = vperm.xlu0 %818, %v796
        %v820 = vpop.permute.xlu0 %819
        %823 = vset.pattern.permute.xlu0 0
        %824 = vperm.xlu0 %823, %v797
        %v825 = vpop.permute.xlu0 %824
        %828 = vset.pattern.permute.xlu0 0
        %829 = vperm.xlu0 %828, %v798
        %v830 = vpop.permute.xlu0 %829
        %833 = vset.pattern.permute.xlu0 0
        %834 = vperm.xlu0 %833, %v799
        %v835 = vpop.permute.xlu0 %834
        %838 = vset.pattern.permute.xlu0 0
        %839 = vperm.xlu0 %838, %v800
        %v840 = vpop.permute.xlu0 %839
        %843 = vset.pattern.permute.xlu0 0
        %844 = vperm.xlu0 %843, %v801
        %v845 = vpop.permute.xlu0 %844
        %v847 = vadd.f32 %v721, %v805
        %v848 = vadd.f32 %v722, %v805
        %v849 = vadd.f32 %v723, %v805
        %v850 = vadd.f32 %v724, %v805
        %v851 = vadd.f32 %v725, %v805
        %v852 = vadd.f32 %v726, %v805
        %v853 = vadd.f32 %v727, %v805
        %v854 = vadd.f32 %v728, %v805
        %v855 = vadd.f32 %v729, %v810
        %v856 = vadd.f32 %v730, %v810
        %v857 = vadd.f32 %v731, %v810
        %v858 = vadd.f32 %v732, %v810
        %v859 = vadd.f32 %v733, %v810
        %v860 = vadd.f32 %v734, %v810
        %v861 = vadd.f32 %v735, %v810
        %v862 = vadd.f32 %v736, %v810
        %v863 = vadd.f32 %v737, %v815
        %v864 = vadd.f32 %v738, %v815
        %v865 = vadd.f32 %v739, %v815
        %v866 = vadd.f32 %v740, %v815
        %v867 = vadd.f32 %v741, %v815
        %v868 = vadd.f32 %v742, %v815
        %v869 = vadd.f32 %v743, %v815
        %v870 = vadd.f32 %v744, %v815
        %v871 = vadd.f32 %v745, %v820
        %v872 = vadd.f32 %v746, %v820
        %v873 = vadd.f32 %v747, %v820
        %v874 = vadd.f32 %v748, %v820
        %v875 = vadd.f32 %v749, %v820
        %v876 = vadd.f32 %v750, %v820
        %v877 = vadd.f32 %v751, %v820
        %v878 = vadd.f32 %v752, %v820
        %v879 = vadd.f32 %v753, %v825
        %v880 = vadd.f32 %v754, %v825
        %v881 = vadd.f32 %v755, %v825
        %v882 = vadd.f32 %v756, %v825
        %v883 = vadd.f32 %v757, %v825
        %v884 = vadd.f32 %v758, %v825
        %v885 = vadd.f32 %v759, %v825
        %v886 = vadd.f32 %v760, %v825
        %v887 = vadd.f32 %v761, %v830
        %v888 = vadd.f32 %v762, %v830
        %v889 = vadd.f32 %v763, %v830
        %v890 = vadd.f32 %v764, %v830
        %v891 = vadd.f32 %v765, %v830
        %v892 = vadd.f32 %v766, %v830
        %v893 = vadd.f32 %v767, %v830
        %v894 = vadd.f32 %v768, %v830
        %v895 = vadd.f32 %v769, %v835
        %v896 = vadd.f32 %v770, %v835
        %v897 = vadd.f32 %v771, %v835
        %v898 = vadd.f32 %v772, %v835
        %v899 = vadd.f32 %v773, %v835
        %v900 = vadd.f32 %v774, %v835
        %v901 = vadd.f32 %v775, %v835
        %v902 = vadd.f32 %v776, %v835
        %v903 = vadd.f32 %v777, %v840
        %v904 = vadd.f32 %v778, %v840
        %v905 = vadd.f32 %v779, %v840
        %v906 = vadd.f32 %v780, %v840
        %v907 = vadd.f32 %v781, %v840
        %v908 = vadd.f32 %v782, %v840
        %v909 = vadd.f32 %v783, %v840
        %v910 = vadd.f32 %v784, %v840
        %v911 = vadd.f32 %v785, %v845
        %v912 = vadd.f32 %v786, %v845
        %v913 = vadd.f32 %v787, %v845
        %v914 = vadd.f32 %v788, %v845
        %v915 = vadd.f32 %v789, %v845
        %v916 = vadd.f32 %v790, %v845
        %v917 = vadd.f32 %v791, %v845
        %v918 = vadd.f32 %v792, %v845
        %v919 = vmax.f32 %v847, 0.0
        %v920 = vmax.f32 %v848, 0.0
        %v921 = vmax.f32 %v849, 0.0
        %v922 = vmax.f32 %v850, 0.0
        %v923 = vmax.f32 %v851, 0.0
        %v924 = vmax.f32 %v852, 0.0
        %v925 = vmax.f32 %v853, 0.0
        %v926 = vmax.f32 %v854, 0.0
        %v927 = vmax.f32 %v855, 0.0
        %v928 = vmax.f32 %v856, 0.0
        %v929 = vmax.f32 %v857, 0.0
        %v930 = vmax.f32 %v858, 0.0
        %v931 = vmax.f32 %v859, 0.0
        %v932 = vmax.f32 %v860, 0.0
        %v933 = vmax.f32 %v861, 0.0
        %v934 = vmax.f32 %v862, 0.0
        %v935 = vmax.f32 %v863, 0.0
        %v936 = vmax.f32 %v864, 0.0
        %v937 = vmax.f32 %v865, 0.0
        %v938 = vmax.f32 %v866, 0.0
        %v939 = vmax.f32 %v867, 0.0
        %v940 = vmax.f32 %v868, 0.0
        %v941 = vmax.f32 %v869, 0.0
        %v942 = vmax.f32 %v870, 0.0
        %v943 = vmax.f32 %v871, 0.0
        %v944 = vmax.f32 %v872, 0.0
        %v945 = vmax.f32 %v873, 0.0
        %v946 = vmax.f32 %v874, 0.0
        %v947 = vmax.f32 %v875, 0.0
        %v948 = vmax.f32 %v876, 0.0
        %v949 = vmax.f32 %v877, 0.0
        %v950 = vmax.f32 %v878, 0.0
        %v951 = vmax.f32 %v879, 0.0
        %v952 = vmax.f32 %v880, 0.0
        %v953 = vmax.f32 %v881, 0.0
        %v954 = vmax.f32 %v882, 0.0
        %v955 = vmax.f32 %v883, 0.0
        %v956 = vmax.f32 %v884, 0.0
        %v957 = vmax.f32 %v885, 0.0
        %v958 = vmax.f32 %v886, 0.0
        %v959 = vmax.f32 %v887, 0.0
        %v960 = vmax.f32 %v888, 0.0
        %v961 = vmax.f32 %v889, 0.0
        %v962 = vmax.f32 %v890, 0.0
        %v963 = vmax.f32 %v891, 0.0
        %v964 = vmax.f32 %v892, 0.0
        %v965 = vmax.f32 %v893, 0.0
        %v966 = vmax.f32 %v894, 0.0
        %v967 = vmax.f32 %v895, 0.0
        %v968 = vmax.f32 %v896, 0.0
        %v969 = vmax.f32 %v897, 0.0
        %v970 = vmax.f32 %v898, 0.0
        %v971 = vmax.f32 %v899, 0.0
        %v972 = vmax.f32 %v900, 0.0
        %v973 = vmax.f32 %v901, 0.0
        %v974 = vmax.f32 %v902, 0.0
        %v975 = vmax.f32 %v903, 0.0
        %v976 = vmax.f32 %v904, 0.0
        %v977 = vmax.f32 %v905, 0.0
        %v978 = vmax.f32 %v906, 0.0
        %v979 = vmax.f32 %v907, 0.0
        %v980 = vmax.f32 %v908, 0.0
        %v981 = vmax.f32 %v909, 0.0
        %v982 = vmax.f32 %v910, 0.0
        %v983 = vmax.f32 %v911, 0.0
        %v984 = vmax.f32 %v912, 0.0
        %v985 = vmax.f32 %v913, 0.0
        %v986 = vmax.f32 %v914, 0.0
        %v987 = vmax.f32 %v915, 0.0
        %v988 = vmax.f32 %v916, 0.0
        %v989 = vmax.f32 %v917, 0.0
        %v990 = vmax.f32 %v918, 0.0
        %991 = vst [vmem:[%s243] sm:$0xff] %v919
        %992 = vst [vmem:[%s243 + $0x8] sm:$0xff] %v920
        %993 = vst [vmem:[%s243 + $0x10] sm:$0xff] %v921
        %994 = vst [vmem:[%s243 + $0x18] sm:$0xff] %v922
        %995 = vst [vmem:[%s243 + $0x20] sm:$0xff] %v923
        %996 = vst [vmem:[%s243 + $0x28] sm:$0xff] %v924
        %997 = vst [vmem:[%s243 + $0x30] sm:$0xff] %v925
        %998 = vst [vmem:[%s243 + $0x38] sm:$0xff] %v926
        %999 = vst [vmem:[%s243 + $0x40] sm:$0xff] %v927
        %1000 = vst [vmem:[%s243 + $0x48] sm:$0xff] %v928
        %1001 = vst [vmem:[%s243 + $0x50] sm:$0xff] %v929
        %1002 = vst [vmem:[%s243 + $0x58] sm:$0xff] %v930
        %1003 = vst [vmem:[%s243 + $0x60] sm:$0xff] %v931
        %1004 = vst [vmem:[%s243 + $0x68] sm:$0xff] %v932
        %1005 = vst [vmem:[%s243 + $0x70] sm:$0xff] %v933
        %1006 = vst [vmem:[%s243 + $0x78] sm:$0xff] %v934
        %1007 = vst [vmem:[%s243 + $0x80] sm:$0xff] %v935
        %1008 = vst [vmem:[%s243 + $0x88] sm:$0xff] %v936
        %1009 = vst [vmem:[%s243 + $0x90] sm:$0xff] %v937
        %1010 = vst [vmem:[%s243 + $0x98] sm:$0xff] %v938
        %1011 = vst [vmem:[%s243 + $0xa0] sm:$0xff] %v939
        %1012 = vst [vmem:[%s243 + $0xa8] sm:$0xff] %v940
        %1013 = vst [vmem:[%s243 + $0xb0] sm:$0xff] %v941
        %1014 = vst [vmem:[%s243 + $0xb8] sm:$0xff] %v942
        %1015 = vst [vmem:[%s243 + $0xc0] sm:$0xff] %v943
        %1016 = vst [vmem:[%s243 + $0xc8] sm:$0xff] %v944
        %1017 = vst [vmem:[%s243 + $0xd0] sm:$0xff] %v945
        %1018 = vst [vmem:[%s243 + $0xd8] sm:$0xff] %v946
        %1019 = vst [vmem:[%s243 + $0xe0] sm:$0xff] %v947
        %1020 = vst [vmem:[%s243 + $0xe8] sm:$0xff] %v948
        %1021 = vst [vmem:[%s243 + $0xf0] sm:$0xff] %v949
        %1022 = vst [vmem:[%s243 + $0xf8] sm:$0xff] %v950
        %1023 = vst [vmem:[%s243 + $0x100] sm:$0xff] %v951
        %1024 = vst [vmem:[%s243 + $0x108] sm:$0xff] %v952
        %1025 = vst [vmem:[%s243 + $0x110] sm:$0xff] %v953
        %1026 = vst [vmem:[%s243 + $0x118] sm:$0xff] %v954
        %1027 = vst [vmem:[%s243 + $0x120] sm:$0xff] %v955
        %1028 = vst [vmem:[%s243 + $0x128] sm:$0xff] %v956
        %1029 = vst [vmem:[%s243 + $0x130] sm:$0xff] %v957
        %1030 = vst [vmem:[%s243 + $0x138] sm:$0xff] %v958
        %1031 = vst [vmem:[%s243 + $0x140] sm:$0xff] %v959
        %1032 = vst [vmem:[%s243 + $0x148] sm:$0xff] %v960
        %1033 = vst [vmem:[%s243 + $0x150] sm:$0xff] %v961
        %1034 = vst [vmem:[%s243 + $0x158] sm:$0xff] %v962
        %1035 = vst [vmem:[%s243 + $0x160] sm:$0xff] %v963
        %1036 = vst [vmem:[%s243 + $0x168] sm:$0xff] %v964
        %1037 = vst [vmem:[%s243 + $0x170] sm:$0xff] %v965
        %1038 = vst [vmem:[%s243 + $0x178] sm:$0xff] %v966
        %1039 = vst [vmem:[%s243 + $0x180] sm:$0xff] %v967
        %1040 = vst [vmem:[%s243 + $0x188] sm:$0xff] %v968
        %1041 = vst [vmem:[%s243 + $0x190] sm:$0xff] %v969
        %1042 = vst [vmem:[%s243 + $0x198] sm:$0xff] %v970
        %1043 = vst [vmem:[%s243 + $0x1a0] sm:$0xff] %v971
        %1044 = vst [vmem:[%s243 + $0x1a8] sm:$0xff] %v972
        %1045 = vst [vmem:[%s243 + $0x1b0] sm:$0xff] %v973
        %1046 = vst [vmem:[%s243 + $0x1b8] sm:$0xff] %v974
        %1047 = vst [vmem:[%s243 + $0x1c0] sm:$0xff] %v975
        %1048 = vst [vmem:[%s243 + $0x1c8] sm:$0xff] %v976
        %1049 = vst [vmem:[%s243 + $0x1d0] sm:$0xff] %v977
        %1050 = vst [vmem:[%s243 + $0x1d8] sm:$0xff] %v978
        %1051 = vst [vmem:[%s243 + $0x1e0] sm:$0xff] %v979
        %1052 = vst [vmem:[%s243 + $0x1e8] sm:$0xff] %v980
        %1053 = vst [vmem:[%s243 + $0x1f0] sm:$0xff] %v981
        %1054 = vst [vmem:[%s243 + $0x1f8] sm:$0xff] %v982
        %1055 = vst [vmem:[%s243 + $0x200] sm:$0xff] %v983
        %1056 = vst [vmem:[%s243 + $0x208] sm:$0xff] %v984
        %1057 = vst [vmem:[%s243 + $0x210] sm:$0xff] %v985
        %1058 = vst [vmem:[%s243 + $0x218] sm:$0xff] %v986
        %1059 = vst [vmem:[%s243 + $0x220] sm:$0xff] %v987
        %1060 = vst [vmem:[%s243 + $0x228] sm:$0xff] %v988
        %1061 = vst [vmem:[%s243 + $0x230] sm:$0xff] %v989
        %1062 = vst [vmem:[%s243 + $0x238] sm:$0xff] %v990
        %s1063 = sand.u32 %s134, 1
        %s1064 = scalar_lea.sflag [#allocation4], %s1063
        %s1065 = sand.u32 %s134, 1
        %s1066 = smul.addr %s1065, 576
        %s1067 = scalar_lea.vmem [#allocation5], %s1066
        // Predicated region
        $region41: #{tpu_custom_call.1} parent=35 // pred_check
          %p1068 = pneg %p144
        $region42: #{tpu_custom_call.1} parent=35 // pred_check_branch
          %1070 = sbr.rel (%p1068) target = $region44
        $region43: #{tpu_custom_call.1} parent=35 // pred_region
          %s1071 = smul.u32 8, %s26
          %s1072 = ssub.s32 25, %s1071
          %p1073 = scmp.lt.s32.totalorder %s1072, 8
          %s1074 = scalar_select %p1073, %s1072, 8
          %s1075 = smul.u32 72, %s1074
          %s1076 = ssub.s32 576, %s1075
          %s1077 = sshll.u32 %s1076, 4
          %1078 = vsyncadd %s1064, %s1077
          %p1079 = scmp.ne.s32.totalorder 0, %s1075
          %s1080 = smul.addr %s25, 225
          %s1081 = sadd.s32 %s1071, %s1080
          %s1082 = smul.addr %s1081, 8
          %s1083 = scalar_lea.hbm %s4, %s1082
          %s1084 = smul.u32 %s1074, 8
          %s1085 = smul.u32 %s1084, 9
          %s1086 = sshll.u32 %s1067, 4
          %s1087 = int_to_ptr.vmem [resolvable:$true] %s1086
          %s1088 = sshll.u32 %s1083, 4
          %s1089 = int_to_ptr.hbm [resolvable:$true] %s1088
          %s1090 = sshll.u32 %s1085, 4
          %1094 = dma.vmem_to_hbm [thread:$0]  (%p1079), %s1087, %s1090, %s1089, %s1064, 1024, 3200, %s1084
        $region44: #{tpu_custom_call.1} parent=35 // pred_fallthru
          _
      $region36: #{tpu_custom_call.1} parent=5 // pred_fallthru
        _
      %p1095 = scmp.le.s32.totalorder 2, %s16
      // Predicated region
      $region45: #{tpu_custom_call.1} parent=5 // pred_check
        %p1096 = pneg %p1095
      $region46: #{tpu_custom_call.1} parent=5 // pred_check_branch
        %1098 = sbr.rel (%p1096) target = $region48
      $region47: #{tpu_custom_call.1} parent=5 // pred_region
        %s1099 = ssub.s32 %s16, 2
        // Predicated region
        $region49: #{tpu_custom_call.1} parent=47 // pred_check
          %p1100 = pneg %p150
        $region50: #{tpu_custom_call.1} parent=47 // pred_check_branch
          %1102 = sbr.rel (%p1100) target = $region52
        $region51: #{tpu_custom_call.1} parent=47 // pred_region
          %s1103 = sand.u32 %s135, 1
          %s1104 = scalar_lea.sflag [#allocation4], %s1103
          %s1105 = sand.u32 %s135, 1
          %s1106 = smul.addr %s1105, 576
          %s1107 = scalar_lea.vmem [#allocation5], %s1106
          %1109 = dma.done %s1104, 9216
        $region52: #{tpu_custom_call.1} parent=47 // pred_fallthru
          _
      $region48: #{tpu_custom_call.1} parent=5 // pred_fallthru
        _
    $region6: #{tpu_custom_call.1} parent=1 // loop_footer
      %s20 = sadd.s32 1, %s16
    $region7: #{tpu_custom_call.1} parent=1 // loop_footer_branch
      %15 = sbr.rel target = $region3
    $region8: #{tpu_custom_call.1} parent=1 // loop_exit
      _
    %1110 = vsyncpa [#allocation3], 1
    %s1111 = scalar_lea.sflag [#allocation3], 1
    %1112 = vsyncpa %s1111, 1
    %1113 = vsyncpa [#allocation4], 1
    %s1114 = scalar_lea.sflag [#allocation4], 1
    %1115 = vsyncpa %s1114, 1

</llo_original>
